<compile_context>
chip_gen: v7x
topology: tpu7x:2x2x1
jax: 0.10.0
libtpu: 0.0.40
codegen_flags: <defaults>
</compile_context>

<pallas_src>
import jax
import jax.numpy as jnp
from jax.experimental import pallas as pl
from jax.experimental.pallas import tpu as pltpu

# Candidate lane-dense widths (all multiples of 128), widest first.
_COL_CANDIDATES = (4096, 2048, 1024, 512, 256, 128)
# Force a multi-step grid (for megacore sharding) only above this size.
_MULTI_STEP_MIN_BYTES = 1 * 1024 * 1024


def _one_plus_kernel(x1_ref, o_ref):
    # hot path: elementwise 1 + x1 on the VPU, lane-dense unmasked stores
    o_ref[...] = x1_ref[...] + jnp.asarray(1, dtype=o_ref.dtype)


def _sublane_multiple(dtype) -> int:
    # f32 -> 8, bf16/f16 -> 16, int8/fp8 -> 32 (sub-32-bit packs along sublanes)
    itemsize = jnp.dtype(dtype).itemsize
    return max(8, 32 // max(itemsize, 1))


def _generation_hints():
    """Returns (target_block_bytes, force_multi_step_for_large_inputs)."""
    try:
        kind = jax.devices()[0].device_kind.lower()
    except Exception:  # pragma: no cover - defensive; never expected on TPU
        kind = ""
    if "v7" in kind:
        # 3.2 TB/s HBM: bigger tiles amortize per-step overhead; 2 TCs -> want
        # >= 2 grid steps so the second TensorCore never idles.
        return 4 * 1024 * 1024, True
    # v5e / v6e: 2 MiB tiles keep the double-buffered working set (~8 MiB)
    # well inside v5e's 16 MiB scoped-VMEM default.
    return 2 * 1024 * 1024, False


def _pick_block_rows(rows, cols, itemsize, sub, target_bytes, force_multi_step):
    """Choose block_rows: sublane-aligned, near the byte target, prefer an
    exact divisor of rows (no masked tail), optionally forcing >= 2 steps."""
    target = max(sub, (target_bytes // (cols * itemsize)) // sub * sub)
    if force_multi_step and rows >= 2 * sub:
        # Cap at ~half the rows (rounded up to the sublane multiple) so the
        # grid has at least 2 steps and the megacore split stays balanced.
        half = pl.cdiv(pl.cdiv(rows, 2), sub) * sub
        target = min(target, half)
    if target >= rows:
        return rows  # single full-extent block (always layout-legal)
    # Prefer an exact divisor of rows that is a multiple of the sublane count.
    best = None
    d = 1
    while d * d <= rows:
        if rows % d == 0:
            for cand in (d, rows // d):
                if cand <= target and cand % sub == 0:
                    if best is None or cand > best:
                        best = cand
        d += 1
    if best is not None:
        return best
    # No clean divisor: fall back to the byte-target size; the last grid block
    # is partial (reads pipeline-padded garbage, stores are masked -> correct).
    return target


def one_plus(x1, x2=None, *, min_pallas_bytes=2 * 1024 * 1024,
             donate_input=False):
    """Pallas implementation of One_plus.forward: returns 1 + x1 (x2 unused).

    donate_input=True aliases the Pallas output onto the kernel input (a
    reshape of x1). This halves peak HBM footprint but does NOT reduce HBM
    traffic, and is only safe if the caller never reads x1 after this call.
    """
    orig_shape = x1.shape
    orig_dtype = x1.dtype
    n = x1.size
    itemsize = jnp.dtype(orig_dtype).itemsize
    total_bytes = n * itemsize

    # Small-input fast path: for tiny tensors the pallas_call launch/pipeline
    # setup dominates; one fused XLA op is strictly cheaper (already roofline).
    if n == 0 or total_bytes < min_pallas_bytes:
        return x1 + jnp.asarray(1, dtype=orig_dtype)

    # Pick a lane-dense width that divides the element count exactly.  If none
    # does, do NOT pad: the fused XLA add is already at HBM roofline, while a
    # pad + pallas + slice round-trip would do ~3x the minimal 2n bytes.
    cols = next((c for c in _COL_CANDIDATES if n % c == 0), None)
    if cols is None:
        return x1 + jnp.asarray(1, dtype=orig_dtype)

    rows = n // cols
    x2d = x1.reshape(rows, cols)

    target_bytes, force_multi = _generation_hints()
    sub = _sublane_multiple(orig_dtype)
    block_rows = _pick_block_rows(
        rows, cols, itemsize, sub, target_bytes,
        force_multi_step=(force_multi and total_bytes > _MULTI_STEP_MIN_BYTES))

    grid = (pl.cdiv(rows, block_rows),)

    out2d = pl.pallas_call(
        _one_plus_kernel,
        out_shape=jax.ShapeDtypeStruct((rows, cols), orig_dtype),
        grid=grid,
        in_specs=[pl.BlockSpec((block_rows, cols), lambda i: (i, 0))],
        out_specs=pl.BlockSpec((block_rows, cols), lambda i: (i, 0)),
        # Alias output onto the input buffer only when the caller has
        # explicitly promised x1 is dead after this call.
        input_output_aliases=({0: 0} if donate_input else {}),
        cost_estimate=pl.CostEstimate(
            flops=n, transcendentals=0, bytes_accessed=2 * total_bytes),
        compiler_params=pltpu.CompilerParams(
            dimension_semantics=("parallel",),  # shardable across v7x's 2 TCs
        ),
    )(x2d)

    return out2d.reshape(orig_shape)


if __name__ == "__main__":
    key = jax.random.PRNGKey(0)
    k1, k2, k3, k4 = jax.random.split(key, 4)

    def _check(x1, x2=None, **kwargs):
        out = one_plus(x1, x2, **kwargs)
        jax.block_until_ready(out)
        expected = x1 + jnp.asarray(1, dtype=x1.dtype)
        assert out.shape == x1.shape, (out.shape, x1.shape)
        assert out.dtype == x1.dtype, (out.dtype, x1.dtype)
        assert jnp.allclose(out.astype(jnp.float32),
                            expected.astype(jnp.float32), atol=1e-6), "mismatch"

    # 1) module-sized input (2, 4, 16, 16); force the Pallas path
    x1 = jax.random.normal(k1, (2, 4, 16, 16), dtype=jnp.float32)
    x2 = jax.random.normal(k2, (2, 4, 16, 16), dtype=jnp.float32)  # unused
    _check(x1, x2, min_pallas_bytes=0)

    # 2) awkward size (not divisible by 128) -> fused XLA fallback path
    xb = jax.random.normal(k3, (2, 3, 40, 50), dtype=jnp.float32)
    _check(xb, None, min_pallas_bytes=0)

    # 3) larger input -> multi-step parallel grid, default (kernel) path
    xc = jax.random.normal(k4, (2, 8, 256, 256), dtype=jnp.float32)
    _check(xc)

    # 4) bf16 input -> sublane-packing-aware block rows, forced Pallas path
    xd = jax.random.normal(k1, (2, 4, 16, 16), dtype=jnp.bfloat16)
    _check(xd, None, min_pallas_bytes=0)

    print("KERNEL_OK")
</pallas_src>

<mosaic_0001>
module attributes {stable_mosaic.version = 11 : i64} {
  func.func @_one_plus_kernel(%arg0: i32, %arg1: memref<1x2048xf32, #tpu.memory_space<vmem>>, %arg2: memref<1x2048xf32, #tpu.memory_space<vmem>>) attributes {dimension_semantics = [#tpu.dimension_semantics<parallel>], iteration_bounds = array<i64: 1>, scalar_prefetch = 0 : i64, scratch_operands = 0 : i64, tpu.core_type = #tpu.core_type<tc>, window_params = [{transform_indices = @transform_0, window_bounds = array<i64: 1, 2048>}, {transform_indices = @transform_1, window_bounds = array<i64: 1, 2048>}]} {
    %c0 = arith.constant 0 : index
    %c0_0 = arith.constant 0 : index
    %0 = vector.load %arg1[%c0, %c0_0] : memref<1x2048xf32, #tpu.memory_space<vmem>>, vector<1x2048xf32>
    %cst = arith.constant 1.000000e+00 : f32
    %1 = vector.broadcast %cst : f32 to vector<1x2048xf32>
    %2 = arith.addf %0, %1 : vector<1x2048xf32>
    %c0_1 = arith.constant 0 : index
    %c0_2 = arith.constant 0 : index
    %3 = vector.load %arg2[%c0_1, %c0_2] : memref<1x2048xf32, #tpu.memory_space<vmem>>, vector<1x2048xf32>
    tpu.vector_store %arg2[%c0_1, %c0_2], %2 {strides = array<i32>} : memref<1x2048xf32, #tpu.memory_space<vmem>>, vector<1x2048xf32>,
    return
  }
  func.func @transform_0(%arg0: i32) -> (i32, i32) {
    %c0_i32 = arith.constant 0 : i32
    %c0_i32_0 = arith.constant 0 : i32
    return %arg0, %c0_i32 : i32, i32
  }
  func.func @transform_1(%arg0: i32) -> (i32, i32) {
    %c0_i32 = arith.constant 0 : i32
    %c0_i32_0 = arith.constant 0 : i32
    return %arg0, %c0_i32 : i32, i32
  }
}

</mosaic_0001>

<llo_original>
// kernel: tpu_custom_call.1
$region0: #{tpu_custom_call.1}
  #allocation0 [shape = 'u32[]', space=smem, size = 0x4, offset = 0x4, fixed_abs, tag = 'smem constant byte address 0x4 - core index']
  #allocation1 [shape = 'u32[144,128]{1,0:T(1,128)}', space=vmem, size = 0x12000, scoped, tag = 'internal scratch']
  %s0 = inlined_call_operand.hbm [shape: f32[1,2048], index: 0, kind: input, shape index: {}]
  %s1 = inlined_call_operand.hbm [shape: f32[1,2048], index: 1, kind: output, shape index: {}]
  %s2 = sld [smem:[#allocation0]]
  $region18: #{tpu_custom_call.1} parent=0
    _
  %s4 = ssub.s32 1, %s2
  %s5 = scalar_select 0, %s4, %s2
  $region1: #{tpu_custom_call.1} parent=0
    #allocation2 [shape = 'u8[8192]{0}', space=vmem, size = 0x2000, scoped, tag = 'input window, operand 0, single buffered']
    #allocation3 [shape = 's32[1]{0}', space=sflag, size = 0x4, scoped, tag = 'scoped memory for tpu_custom_call.1']
    #allocation4 [shape = 's32[1]{0}', space=sflag, size = 0x4, scoped, tag = 'scoped memory for tpu_custom_call.1']
    #allocation5 [shape = 'u8[8192]{0}', space=vmem, size = 0x2000, scoped, tag = 'output window, operand 0, single buffered']
    %6 = vsyncpa [#allocation3], 0
    %7 = vsyncpa [#allocation4], 0
    // Predicated region
    $region2: #{tpu_custom_call.1} parent=1 // pred_check
      _
    $region3: #{tpu_custom_call.1} parent=1 // pred_check_branch
      %9 = sbr.rel (0) target = $region5
    $region4: #{tpu_custom_call.1} parent=1 // pred_region
      %s11 = ssub.s32 256, 256
      %12 = vsyncadd [#allocation3], %s11
      %s14 = sshll.u32 [#allocation2], 4
      %s15 = int_to_ptr.vmem [resolvable:$true] %s14
      %17 = dma.hbm_to_vmem [thread:$0]  %s0, 256, %s15, [#allocation3]
    $region5: #{tpu_custom_call.1} parent=1 // pred_fallthru
      _
    // Predicated region
    $region6: #{tpu_custom_call.1} parent=1 // pred_check
      _
    $region7: #{tpu_custom_call.1} parent=1 // pred_check_branch
      %19 = sbr.rel (0) target = $region9
    $region8: #{tpu_custom_call.1} parent=1 // pred_region
      %20 = dma.done [#allocation3], 256
    $region9: #{tpu_custom_call.1} parent=1 // pred_fallthru
      _
    %v21 = vld [vmem:[#allocation2] sm:$0xff]
    %v22 = vld [vmem:[#allocation2 + $0x8] sm:$0xff]
    %v23 = vadd.f32 %v21, 1.0
    %v24 = vadd.f32 %v22, 1.0
    %25 = vst [vmem:[#allocation5] sm:$0xff] %v23
    %26 = vst [vmem:[#allocation5 + $0x8] sm:$0xff] %v24
    // Predicated region
    $region10: #{tpu_custom_call.1} parent=1 // pred_check
      _
    $region11: #{tpu_custom_call.1} parent=1 // pred_check_branch
      %28 = sbr.rel (0) target = $region13
    $region12: #{tpu_custom_call.1} parent=1 // pred_region
      %s30 = ssub.s32 256, 256
      %31 = vsyncadd [#allocation4], %s30
      %s33 = sshll.u32 [#allocation5], 4
      %s34 = int_to_ptr.vmem [resolvable:$true] %s33
      %36 = dma.vmem_to_hbm [thread:$0]  %s34, 256, %s1, [#allocation4]
    $region13: #{tpu_custom_call.1} parent=1 // pred_fallthru
      _
    // Predicated region
    $region14: #{tpu_custom_call.1} parent=1 // pred_check
      _
    $region15: #{tpu_custom_call.1} parent=1 // pred_check_branch
      %38 = sbr.rel (0) target = $region17
    $region16: #{tpu_custom_call.1} parent=1 // pred_region
      %39 = dma.done [#allocation4], 256
    $region17: #{tpu_custom_call.1} parent=1 // pred_fallthru
      _
    %40 = vsyncpa [#allocation3], 1
    %41 = vsyncpa [#allocation4], 1

</llo_original>
